<compile_context>
chip_gen: v6e
topology: v6e:2x2x1
jax: 0.10.0
libtpu: 0.0.40
codegen_flags: <defaults>
</compile_context>

<pallas_src>
import functools

import jax
import jax.numpy as jnp
from jax.experimental import pallas as pl
from jax.experimental.pallas import tpu as pltpu

KERNEL_SIZE = 3


def _causal_dwconv_kernel(x_ref, w_ref, b_ref, o_ref, halo_ref, *, kernel_size):
    """One (lane_block, seq_block) tile of the causal depthwise conv.

    out[t, l] = b[l] + sum_j w[j, l] * x[t - (K-1) + j, l]

    History rows (t < 0 within this tile) come from `halo_ref`, which holds the
    last K-1 rows of the previous seq tile (zeros for the first seq tile).
    """
    K = kernel_size
    seq_blk = pl.program_id(1)

    @pl.when(seq_blk == 0)
    def _():
        halo_ref[...] = jnp.zeros_like(halo_ref)        # causal zero padding

    x = x_ref[...]                                      # [tS, tL], input dtype
    w = w_ref[...].astype(jnp.float32)                  # [K, tL]
    b = b_ref[...].astype(jnp.float32)                  # [1, tL]
    halo = halo_ref[...]                                # [K-1, tL], input dtype
    tS = x.shape[0]

    # Tap j = K-1 (shift 0).
    acc = b + x.astype(jnp.float32) * w[K - 1][None, :]

    # Taps with shift s = 1..K-1: shifted[t] = x[t - s]; rows t < s come from
    # the halo.  Iterative roll-by-1 keeps previously inserted halo rows
    # flowing forward, so only row 0 needs fixing each step.
    row = jax.lax.broadcasted_iota(jnp.int32, (tS, 1), 0)
    shifted = x
    for s in range(1, K):
        shifted = pltpu.roll(shifted, shift=1, axis=0)              # XLU rotate
        shifted = jnp.where(row == 0, halo[K - 1 - s][None, :], shifted)
        acc = acc + shifted.astype(jnp.float32) * w[K - 1 - s][None, :]

    o_ref[...] = acc.astype(o_ref.dtype)

    # Carry the last K-1 rows of this tile to the next seq block.
    if K > 1:
        halo_ref[...] = x[tS - (K - 1):, :]


def _pick_lane_tile(L, target):
    """Largest multiple of 128 <= target that divides L; else the full dim."""
    if L % 128 != 0:
        return L  # fall back: whole lane dim in one block (correct, slower)
    t = (min(max(target, 128), L) // 128) * 128
    while t >= 128:
        if L % t == 0:
            return t
        t -= 128
    return L


@functools.partial(jax.jit, static_argnames=("kernel_size", "block_s", "block_l"))
def spatial_depthwise_per_head_conv(x_sbhd, weight_kc, bias_c, *,
                                    kernel_size=KERNEL_SIZE,
                                    block_s=512, block_l=512):
    """x_sbhd: [seq_len, batch, heads, d_k] -> same-shape causal depthwise conv."""
    S, B, H, D = x_sbhd.shape
    C = H * D
    L = B * C
    K = kernel_size

    # Free contiguous reshape: [S, B, H, D] -> [S, B*C].  Lane l maps to
    # channel l % C, so weights/bias are tiled along the (tiny) lane axis.
    x2d = x_sbhd.reshape(S, L)
    w_full = jnp.tile(weight_kc.reshape(K, C), (1, B))      # [K, L]
    b_full = jnp.tile(bias_c.reshape(1, C), (1, B))         # [1, L]

    tL = _pick_lane_tile(L, block_l)
    tS = min(block_s, S)
    Sp = pl.cdiv(S, tS) * tS
    if Sp != S:
        # TODO(synk): ragged seq tiles — zero-pad the tail (trailing rows never
        # influence valid causal outputs) instead of relying on block masking.
        x2d = jnp.pad(x2d, ((0, Sp - S), (0, 0)))

    grid = (L // tL, Sp // tS)

    out2d = pl.pallas_call(
        functools.partial(_causal_dwconv_kernel, kernel_size=K),
        out_shape=jax.ShapeDtypeStruct((Sp, L), x_sbhd.dtype),
        grid_spec=pltpu.PrefetchScalarGridSpec(
            num_scalar_prefetch=0,
            grid=grid,
            in_specs=[
                pl.BlockSpec((tS, tL), lambda li, si: (si, li)),
                pl.BlockSpec((K, tL), lambda li, si: (0, li)),
                pl.BlockSpec((1, tL), lambda li, si: (0, li)),
            ],
            out_specs=pl.BlockSpec((tS, tL), lambda li, si: (si, li)),
            scratch_shapes=[pltpu.VMEM((max(K - 1, 1), tL), x_sbhd.dtype)],
        ),
        compiler_params=pltpu.CompilerParams(
            dimension_semantics=("parallel", "arbitrary"),
        ),
    )(x2d, w_full, b_full)

    if Sp != S:
        out2d = out2d[:S]
    return out2d.reshape(S, B, H, D)


def _reference(x_sbhd, weight_kc, bias_c, kernel_size=KERNEL_SIZE):
    """Pure-JAX reference of the PyTorch forward (causal depthwise conv)."""
    S, B, H, D = x_sbhd.shape
    C = H * D
    x = x_sbhd.reshape(S, B, C).astype(jnp.float32)
    out = jnp.zeros_like(x) + bias_c[None, None, :]
    for j in range(kernel_size):
        shift = kernel_size - 1 - j
        xs = jnp.pad(x, ((shift, 0), (0, 0), (0, 0)))[:S]
        out = out + xs * weight_kc[j][None, None, :]
    return out.reshape(S, B, H, D).astype(x_sbhd.dtype)


if __name__ == "__main__":
    # Small but non-trivial shapes: [seq_len, batch, heads, d_k]
    # lane dim = batch*heads*d_k = 256 -> 2 lane blocks; 3 seq blocks of 16
    # rows exercise the causal-halo carry and the parallel lane axis.
    seq_len, batch, heads, d_k = 48, 2, 4, 32
    C = heads * d_k
    K = KERNEL_SIZE

    key = jax.random.PRNGKey(0)
    kx, kw, kb = jax.random.split(key, 3)

    x = jax.random.normal(kx, (seq_len, batch, heads, d_k), dtype=jnp.float32)

    # Conv1d(in=C, out=C, kernel=(K,), groups=C): torch weight [C, 1, K],
    # bias [C].  Stored here as weight_kc [K, C] (lane-dense layout).
    bound = 1.0 / (K ** 0.5)
    weight_kc = jax.random.uniform(kw, (K, C), jnp.float32,
                                   minval=-bound, maxval=bound)
    bias_c = jax.random.uniform(kb, (C,), jnp.float32,
                                minval=-bound, maxval=bound)

    out = spatial_depthwise_per_head_conv(x, weight_kc, bias_c,
                                          block_s=16, block_l=128)
    out = jax.block_until_ready(out)

    ref = _reference(x, weight_kc, bias_c, K)
    assert out.shape == (seq_len, batch, heads, d_k)
    assert jnp.allclose(out, ref, atol=1e-5, rtol=1e-5), \
        float(jnp.max(jnp.abs(out - ref)))

    print("KERNEL_OK")
</pallas_src>

<mosaic_0001>
module attributes {stable_mosaic.version = 11 : i64} {
  func.func @_causal_dwconv_kernel(%arg0: i32, %arg1: i32, %arg2: memref<16x128xf32, #tpu.memory_space<vmem>>, %arg3: memref<3x128xf32, #tpu.memory_space<vmem>>, %arg4: memref<1x128xf32, #tpu.memory_space<vmem>>, %arg5: memref<16x128xf32, #tpu.memory_space<vmem>>, %arg6: memref<2x128xf32, #tpu.memory_space<vmem>>) attributes {dimension_semantics = [#tpu.dimension_semantics<parallel>, #tpu.dimension_semantics<arbitrary>], iteration_bounds = array<i64: 2, 3>, scalar_prefetch = 0 : i64, scratch_operands = 1 : i64, tpu.core_type = #tpu.core_type<tc>, window_params = [{transform_indices = @transform_0, window_bounds = array<i64: 16, 128>}, {transform_indices = @transform_1, window_bounds = array<i64: 3, 128>}, {transform_indices = @transform_2, window_bounds = array<i64: 1, 128>}, {transform_indices = @transform_3, window_bounds = array<i64: 16, 128>}]} {
    %c0_i32 = arith.constant 0 : i32
    %0 = arith.cmpi eq, %arg1, %c0_i32 : i32
    %1 = arith.extui %0 : i1 to i32
    %c0_i32_0 = arith.constant 0 : i32
    %2 = arith.cmpi ne, %1, %c0_i32_0 : i32
    scf.if %2 {
      %cst = arith.constant 0.000000e+00 : f32
      %52 = vector.broadcast %cst : f32 to vector<2x128xf32>
      %c0_15 = arith.constant 0 : index
      %c0_16 = arith.constant 0 : index
      %53 = vector.load %arg6[%c0_15, %c0_16] : memref<2x128xf32, #tpu.memory_space<vmem>>, vector<2x128xf32>
      tpu.vector_store %arg6[%c0_15, %c0_16], %52 {strides = array<i32>} : memref<2x128xf32, #tpu.memory_space<vmem>>, vector<2x128xf32>,
    } else {
    }
    %c0 = arith.constant 0 : index
    %c0_1 = arith.constant 0 : index
    %3 = vector.load %arg2[%c0, %c0_1] : memref<16x128xf32, #tpu.memory_space<vmem>>, vector<16x128xf32>
    %c0_2 = arith.constant 0 : index
    %c0_3 = arith.constant 0 : index
    %4 = vector.load %arg3[%c0_2, %c0_3] : memref<3x128xf32, #tpu.memory_space<vmem>>, vector<3x128xf32>
    %c0_4 = arith.constant 0 : index
    %c0_5 = arith.constant 0 : index
    %5 = vector.load %arg4[%c0_4, %c0_5] : memref<1x128xf32, #tpu.memory_space<vmem>>, vector<1x128xf32>
    %c0_6 = arith.constant 0 : index
    %c0_7 = arith.constant 0 : index
    %6 = vector.load %arg6[%c0_6, %c0_7] : memref<2x128xf32, #tpu.memory_space<vmem>>, vector<2x128xf32>
    %7 = vector.extract_strided_slice %4 {offsets = [2, 0], sizes = [1, 128], strides = [1, 1]} : vector<3x128xf32> to vector<1x128xf32>
    %8 = vector.shape_cast %7 : vector<1x128xf32> to vector<128xf32>
    %9 = vector.shape_cast %8 : vector<128xf32> to vector<1x128xf32>
    %10 = vector.broadcast %9 : vector<1x128xf32> to vector<16x128xf32>
    %11 = arith.mulf %3, %10 : vector<16x128xf32>
    %12 = vector.broadcast %5 : vector<1x128xf32> to vector<16x128xf32>
    %13 = arith.addf %12, %11 : vector<16x128xf32>
    %14 = tpu.iota {dimensions = array<i32: 0>} : vector<16x1xi32>
    %c1_i32 = arith.constant 1 : i32
    %15 = tpu.dynamic_rotate %3 by %c1_i32 dim 0 : vector<16x128xf32>, i32 -> vector<16x128xf32>
    %c0_i32_8 = arith.constant 0 : i32
    %16 = vector.broadcast %c0_i32_8 : i32 to vector<16x1xi32>
    %17 = arith.cmpi eq, %14, %16 : vector<16x1xi32>
    %18 = vector.extract_strided_slice %6 {offsets = [1, 0], sizes = [1, 128], strides = [1, 1]} : vector<2x128xf32> to vector<1x128xf32>
    %19 = vector.shape_cast %18 : vector<1x128xf32> to vector<128xf32>
    %20 = vector.shape_cast %19 : vector<128xf32> to vector<1x128xf32>
    %21 = vector.shape_cast %17 : vector<16x1xi1> to vector<16x1xi1>
    %22 = vector.broadcast %21 : vector<16x1xi1> to vector<16x128xi1>
    %23 = vector.shape_cast %20 : vector<1x128xf32> to vector<1x128xf32>
    %24 = vector.broadcast %23 : vector<1x128xf32> to vector<16x128xf32>
    %25 = arith.select %22, %24, %15 : vector<16x128xi1>, vector<16x128xf32>
    %26 = vector.extract_strided_slice %4 {offsets = [1, 0], sizes = [1, 128], strides = [1, 1]} : vector<3x128xf32> to vector<1x128xf32>
    %27 = vector.shape_cast %26 : vector<1x128xf32> to vector<128xf32>
    %28 = vector.shape_cast %27 : vector<128xf32> to vector<1x128xf32>
    %29 = vector.broadcast %28 : vector<1x128xf32> to vector<16x128xf32>
    %30 = arith.mulf %25, %29 : vector<16x128xf32>
    %31 = arith.addf %13, %30 : vector<16x128xf32>
    %c1_i32_9 = arith.constant 1 : i32
    %32 = tpu.dynamic_rotate %25 by %c1_i32_9 dim 0 : vector<16x128xf32>, i32 -> vector<16x128xf32>
    %c0_i32_10 = arith.constant 0 : i32
    %33 = vector.broadcast %c0_i32_10 : i32 to vector<16x1xi32>
    %34 = arith.cmpi eq, %14, %33 : vector<16x1xi32>
    %35 = vector.extract_strided_slice %6 {offsets = [0, 0], sizes = [1, 128], strides = [1, 1]} : vector<2x128xf32> to vector<1x128xf32>
    %36 = vector.shape_cast %35 : vector<1x128xf32> to vector<128xf32>
    %37 = vector.shape_cast %36 : vector<128xf32> to vector<1x128xf32>
    %38 = vector.shape_cast %34 : vector<16x1xi1> to vector<16x1xi1>
    %39 = vector.broadcast %38 : vector<16x1xi1> to vector<16x128xi1>
    %40 = vector.shape_cast %37 : vector<1x128xf32> to vector<1x128xf32>
    %41 = vector.broadcast %40 : vector<1x128xf32> to vector<16x128xf32>
    %42 = arith.select %39, %41, %32 : vector<16x128xi1>, vector<16x128xf32>
    %43 = vector.extract_strided_slice %4 {offsets = [0, 0], sizes = [1, 128], strides = [1, 1]} : vector<3x128xf32> to vector<1x128xf32>
    %44 = vector.shape_cast %43 : vector<1x128xf32> to vector<128xf32>
    %45 = vector.shape_cast %44 : vector<128xf32> to vector<1x128xf32>
    %46 = vector.broadcast %45 : vector<1x128xf32> to vector<16x128xf32>
    %47 = arith.mulf %42, %46 : vector<16x128xf32>
    %48 = arith.addf %31, %47 : vector<16x128xf32>
    %c0_11 = arith.constant 0 : index
    %c0_12 = arith.constant 0 : index
    %49 = vector.load %arg5[%c0_11, %c0_12] : memref<16x128xf32, #tpu.memory_space<vmem>>, vector<16x128xf32>
    tpu.vector_store %arg5[%c0_11, %c0_12], %48 {strides = array<i32>} : memref<16x128xf32, #tpu.memory_space<vmem>>, vector<16x128xf32>,
    %50 = vector.extract_strided_slice %3 {offsets = [14, 0], sizes = [2, 128], strides = [1, 1]} : vector<16x128xf32> to vector<2x128xf32>
    %c0_13 = arith.constant 0 : index
    %c0_14 = arith.constant 0 : index
    %51 = vector.load %arg6[%c0_13, %c0_14] : memref<2x128xf32, #tpu.memory_space<vmem>>, vector<2x128xf32>
    tpu.vector_store %arg6[%c0_13, %c0_14], %50 {strides = array<i32>} : memref<2x128xf32, #tpu.memory_space<vmem>>, vector<2x128xf32>,
    return
  }
  func.func @transform_0(%arg0: i32, %arg1: i32) -> (i32, i32) {
    %c0_i32 = arith.constant 0 : i32
    return %arg1, %arg0 : i32, i32
  }
  func.func @transform_1(%arg0: i32, %arg1: i32) -> (i32, i32) {
    %c0_i32 = arith.constant 0 : i32
    %c0_i32_0 = arith.constant 0 : i32
    return %c0_i32, %arg0 : i32, i32
  }
  func.func @transform_2(%arg0: i32, %arg1: i32) -> (i32, i32) {
    %c0_i32 = arith.constant 0 : i32
    %c0_i32_0 = arith.constant 0 : i32
    return %c0_i32, %arg0 : i32, i32
  }
  func.func @transform_3(%arg0: i32, %arg1: i32) -> (i32, i32) {
    %c0_i32 = arith.constant 0 : i32
    return %arg1, %arg0 : i32, i32
  }
}

</mosaic_0001>

<llo_original>
// kernel: spatial_depthwise_per_head_conv.1
$region0: #{spatial_depthwise_per_head_conv.1}
  #allocation0 [shape = 'u32[]', space=smem, size = 0x4, offset = 0x4, fixed_abs, tag = 'smem constant byte address 0x4 - core index']
  #allocation1 [shape = 'u32[144,128]{1,0:T(1,128)}', space=vmem, size = 0x12000, scoped, tag = 'internal scratch']
  #allocation2 [shape = 'f32[2,128]{1,0:T(2,128)}', space=vmem, size = 0x400, scoped, tag = 'scratch operand']
  %s0 = inlined_call_operand.vmem [shape: f32[48,256], index: 0, kind: input, shape index: {}]
  %s1 = inlined_call_operand.vmem [shape: f32[3,256], index: 1, kind: input, shape index: {}]
  %s2 = inlined_call_operand.vmem [shape: f32[1,256], index: 2, kind: input, shape index: {}]
  %s3 = inlined_call_operand.vmem [shape: f32[48,256], index: 3, kind: output, shape index: {}]
  %s4 = sld [smem:[#allocation0]]
  $region121: #{spatial_depthwise_per_head_conv.1} parent=0
    _
  %s6 = ssub.s32 1, %s4
  %s7 = scalar_select 0, %s6, %s4
  $region1: #{spatial_depthwise_per_head_conv.1} parent=0
    #allocation3 [shape = 'u8[16384]{0}', space=vmem, size = 0x4000, scoped, tag = 'input window, operand 0']
    #allocation4 [shape = 'u8[16384]{0}', space=vmem, size = 0x4000, scoped, tag = 'output window, operand 0']
    loop: start=0, step=1, limit=8
    $region2: #{spatial_depthwise_per_head_conv.1} parent=1 // loop_pre_header
      _
    $region3: #{spatial_depthwise_per_head_conv.1} parent=1 // loop_header
      %s9 = sphi 0, %s13
      %p10 = scmp.ge.s32.totalorder %s9, 8
      %s16 = sphi 0, %s28
      %s17 = sphi 0, %s24
      %s18 = sphi 0, %s16
      %s19 = sphi 0, %s17
      %s20 = sphi 0, %s18
      %s21 = sphi 0, %s19
      %s33 = sphi 0, %s35
      %s36 = sphi 0, %s33
      %s37 = sphi 0, %s36
      %s53 = sphi 0, %s37
      %s59 = sphi 0, %s61
      %s62 = sphi 0, %s59
      %s63 = sphi 0, %s62
      %s79 = sphi 0, %s63
      %s85 = sphi 0, %s87
      %s88 = sphi 0, %s85
      %s89 = sphi 0, %s88
      %s105 = sphi 0, %s89
      %s113 = sphi 0, %s115
      %s116 = sphi 0, %s113
      %s117 = sphi 0, %s116
      %s133 = sphi 0, %s117
    $region4: #{spatial_depthwise_per_head_conv.1} parent=1 // loop_header_branch
      %12 = sbr.rel (%p10) target = $region8
    $region5: #{spatial_depthwise_per_head_conv.1} parent=1 // loop_body
      %s14 = ssub.s32 %s9, 1
      %s15 = ssub.s32 %s9, 2
      %s22 = sadd.s32 1, %s17
      %p23 = scmp.ge.s32.totalorder %s22, 3
      %s24 = scalar_select %p23, 0, %s22
      %s25 = sadd.s32 1, %s16
      %s26 = scalar_select %p23, %s25, %s16
      %p27 = scmp.ge.s32.totalorder %s26, 2
      %s28 = scalar_select %p27, 0, %s26
      %s29 = ssub.s32 %s17, %s24
      %s30 = ssub.s32 %s16, %s28
      %s31 = sor.u32 %s29, %s30
      %p32 = scmp.eq.s32.totalorder %s31, 0
      %s34 = sadd.s32 %s33, 1
      %s35 = scalar_select %p32, %s33, %s34
      %p38 = pneg %p32
      %p39 = scmp.eq.s32.totalorder %s9, 5
      %p40 = por %p38, %p39
      %p41 = scmp.ne.s32.totalorder %s33, %s36
      %p42 = scmp.eq.s32.totalorder %s9, 0
      %p43 = por %p41, %p42
      %p44 = scmp.ne.s32.totalorder %s33, %s36
      %p45 = scmp.eq.s32.totalorder %s14, 5
      %p46 = por %p44, %p45
      %p47 = scmp.ne.s32.totalorder %s36, %s37
      %p48 = scmp.eq.s32.totalorder %s14, 0
      %p49 = por %p47, %p48
      %p50 = scmp.ne.s32.totalorder %s36, %s37
      %p51 = scmp.eq.s32.totalorder %s15, 5
      %p52 = por %p50, %p51
      %p54 = scmp.ne.s32.totalorder %s37, %s53
      %p55 = scmp.eq.s32.totalorder %s15, 0
      %p56 = por %p54, %p55
      %s57 = ssub.s32 %s16, %s28
      %p58 = scmp.eq.s32.totalorder %s57, 0
      %s60 = sadd.s32 %s59, 1
      %s61 = scalar_select %p58, %s59, %s60
      %p64 = pneg %p58
      %p65 = scmp.eq.s32.totalorder %s9, 5
      %p66 = por %p64, %p65
      %p67 = scmp.ne.s32.totalorder %s59, %s62
      %p68 = scmp.eq.s32.totalorder %s9, 0
      %p69 = por %p67, %p68
      %p70 = scmp.ne.s32.totalorder %s59, %s62
      %p71 = scmp.eq.s32.totalorder %s14, 5
      %p72 = por %p70, %p71
      %p73 = scmp.ne.s32.totalorder %s62, %s63
      %p74 = scmp.eq.s32.totalorder %s14, 0
      %p75 = por %p73, %p74
      %p76 = scmp.ne.s32.totalorder %s62, %s63
      %p77 = scmp.eq.s32.totalorder %s15, 5
      %p78 = por %p76, %p77
      %p80 = scmp.ne.s32.totalorder %s63, %s79
      %p81 = scmp.eq.s32.totalorder %s15, 0
      %p82 = por %p80, %p81
      %s83 = ssub.s32 %s16, %s28
      %p84 = scmp.eq.s32.totalorder %s83, 0
      %s86 = sadd.s32 %s85, 1
      %s87 = scalar_select %p84, %s85, %s86
      %p90 = pneg %p84
      %p91 = scmp.eq.s32.totalorder %s9, 5
      %p92 = por %p90, %p91
      %p93 = scmp.ne.s32.totalorder %s85, %s88
      %p94 = scmp.eq.s32.totalorder %s9, 0
      %p95 = por %p93, %p94
      %p96 = scmp.ne.s32.totalorder %s85, %s88
      %p97 = scmp.eq.s32.totalorder %s14, 5
      %p98 = por %p96, %p97
      %p99 = scmp.ne.s32.totalorder %s88, %s89
      %p100 = scmp.eq.s32.totalorder %s14, 0
      %p101 = por %p99, %p100
      %p102 = scmp.ne.s32.totalorder %s88, %s89
      %p103 = scmp.eq.s32.totalorder %s15, 5
      %p104 = por %p102, %p103
      %p106 = scmp.ne.s32.totalorder %s89, %s105
      %p107 = scmp.eq.s32.totalorder %s15, 0
      %p108 = por %p106, %p107
      %s109 = ssub.s32 %s17, %s24
      %s110 = ssub.s32 %s16, %s28
      %s111 = sor.u32 %s109, %s110
      %p112 = scmp.eq.s32.totalorder %s111, 0
      %s114 = sadd.s32 %s113, 1
      %s115 = scalar_select %p112, %s113, %s114
      %p118 = pneg %p112
      %p119 = scmp.eq.s32.totalorder %s9, 5
      %p120 = por %p118, %p119
      %p121 = scmp.ne.s32.totalorder %s113, %s116
      %p122 = scmp.eq.s32.totalorder %s9, 0
      %p123 = por %p121, %p122
      %p124 = scmp.ne.s32.totalorder %s113, %s116
      %p125 = scmp.eq.s32.totalorder %s14, 5
      %p126 = por %p124, %p125
      %p127 = scmp.ne.s32.totalorder %s116, %s117
      %p128 = scmp.eq.s32.totalorder %s14, 0
      %p129 = por %p127, %p128
      %p130 = scmp.ne.s32.totalorder %s116, %s117
      %p131 = scmp.eq.s32.totalorder %s15, 5
      %p132 = por %p130, %p131
      %p134 = scmp.ne.s32.totalorder %s117, %s133
      %p135 = scmp.eq.s32.totalorder %s15, 0
      %p136 = por %p134, %p135
      %p137 = scmp.le.s32.totalorder 1, %s9
      %p138 = scmp.lt.s32.totalorder %s9, 7
      %p139 = pnand %p137, %p138
      %p140 = pneg %p139
      // Predicated region
      $region9: #{spatial_depthwise_per_head_conv.1} parent=5 // pred_check
        _
      $region10: #{spatial_depthwise_per_head_conv.1} parent=5 // pred_check_branch
        %142 = sbr.rel (%p139) target = $region12
      $region11: #{spatial_depthwise_per_head_conv.1} parent=5 // pred_region
        %s143 = ssub.s32 %s9, 1
      $region12: #{spatial_depthwise_per_head_conv.1} parent=5 // pred_fallthru
        _
      %p144 = scmp.lt.s32.totalorder %s9, 6
      // Predicated region
      $region13: #{spatial_depthwise_per_head_conv.1} parent=5 // pred_check
        %p145 = pneg %p144
      $region14: #{spatial_depthwise_per_head_conv.1} parent=5 // pred_check_branch
        %147 = sbr.rel (%p145) target = $region16
      $region15: #{spatial_depthwise_per_head_conv.1} parent=5 // pred_region
        // Predicated region
        $region17: #{spatial_depthwise_per_head_conv.1} parent=15 // pred_check
          %p148 = pneg %p43
        $region18: #{spatial_depthwise_per_head_conv.1} parent=15 // pred_check_branch
          %150 = sbr.rel (%p148) target = $region20
        $region19: #{spatial_depthwise_per_head_conv.1} parent=15 // pred_region
          %s151 = sand.u32 %s33, 1
          %s152 = sand.u32 %s33, 1
          %s153 = smul.addr %s152, 16
          %s154 = scalar_lea.vmem [#allocation3], %s153
          %s155 = smul.u32 2, %s17
          %s156 = smul.addr %s155, 2
          %s157 = sadd.s32 %s16, %s156
          %s158 = smul.addr %s157, 8
          %s159 = scalar_lea.vmem %s0, %s158
          // Predicated region
          $region21: #{spatial_depthwise_per_head_conv.1} parent=19 // pred_check
            _
          $region22: #{spatial_depthwise_per_head_conv.1} parent=19 // pred_check_branch
            %161 = sbr.rel (0) target = $region24
          $region23: #{spatial_depthwise_per_head_conv.1} parent=19 // pred_region
            // Predicated region
            $region25: #{spatial_depthwise_per_head_conv.1} parent=23 // pred_check
              _
            $region26: #{spatial_depthwise_per_head_conv.1} parent=23 // pred_check_branch
              %163 = sbr.rel (0) target = $region28
            $region27: #{spatial_depthwise_per_head_conv.1} parent=23 // pred_region
              // Predicated region
              $region40: #{spatial_depthwise_per_head_conv.1} parent=27 // pred_check
                _
              $region41: #{spatial_depthwise_per_head_conv.1} parent=27 // pred_check_branch
                %181 = sbr.rel (0) target = $region43
              $region42: #{spatial_depthwise_per_head_conv.1} parent=27 // pred_region
                loop: start=0, step=1, limit=1
                $region44: #{spatial_depthwise_per_head_conv.1} parent=42 // loop_pre_header
                  _
                $region45: #{spatial_depthwise_per_head_conv.1} parent=42 // loop_header
                  %s183 = sphi 0, %s187
                  %p184 = scmp.ge.s32.totalorder %s183, 1
                  %s188 = sphi %s159, %s159
                  %s189 = sphi %s154, %s154
                $region46: #{spatial_depthwise_per_head_conv.1} parent=42 // loop_header_branch
                  %186 = sbr.rel (%p184) target = $region50
                $region47: #{spatial_depthwise_per_head_conv.1} parent=42 // loop_body
                  %v190 = vld [vmem:[%s188] sm:$0xff]
                  %191 = vst [vmem:[%s189] sm:$0xff] %v190
                  %v192 = vld [vmem:[%s188 + $0x10] sm:$0xff]
                  %193 = vst [vmem:[%s189 + $0x8] sm:$0xff] %v192
                $region48: #{spatial_depthwise_per_head_conv.1} parent=42 // loop_footer
                  %s187 = sadd.s32 1, %s183
                $region49: #{spatial_depthwise_per_head_conv.1} parent=42 // loop_footer_branch
                  %182 = sbr.rel target = $region45
                $region50: #{spatial_depthwise_per_head_conv.1} parent=42 // loop_exit
                  _
              $region43: #{spatial_depthwise_per_head_conv.1} parent=27 // pred_fallthru
                _
              // Predicated region
              $region51: #{spatial_depthwise_per_head_conv.1} parent=27 // pred_check
                _
              $region52: #{spatial_depthwise_per_head_conv.1} parent=27 // pred_check_branch
                %195 = sbr.rel target = $region54
              $region53: #{spatial_depthwise_per_head_conv.1} parent=27 // pred_region
                _
              $region54: #{spatial_depthwise_per_head_conv.1} parent=27 // pred_fallthru
                _
            $region28: #{spatial_depthwise_per_head_conv.1} parent=23 // pred_fallthru
              _
            // Predicated region
            $region29: #{spatial_depthwise_per_head_conv.1} parent=23 // pred_check
              _
            $region30: #{spatial_depthwise_per_head_conv.1} parent=23 // pred_check_branch
              %165 = sbr.rel target = $region32
            $region31: #{spatial_depthwise_per_head_conv.1} parent=23 // pred_region
              %s167 = ssub.s32 256, 1
              loop: start=0, step=1, limit=1
              $region33: #{spatial_depthwise_per_head_conv.1} parent=31 // loop_pre_header
                _
              $region34: #{spatial_depthwise_per_head_conv.1} parent=31 // loop_header
                %s169 = sphi 0, %s173
                %p170 = scmp.ge.s32.totalorder %s169, 1
                %s174 = sphi %s159, %s159
                %s175 = sphi %s154, %s154
              $region35: #{spatial_depthwise_per_head_conv.1} parent=31 // loop_header_branch
                %172 = sbr.rel (%p170) target = $region39
              $region36: #{spatial_depthwise_per_head_conv.1} parent=31 // loop_body
                %v176 = vld [vmem:[%s174] sm:%s167]
                %177 = vst [vmem:[%s175] sm:%s167] %v176
                %v178 = vld [vmem:[%s174 + $0x10] sm:%s167]
                %179 = vst [vmem:[%s175 + $0x8] sm:%s167] %v178
              $region37: #{spatial_depthwise_per_head_conv.1} parent=31 // loop_footer
                %s173 = sadd.s32 1, %s169
              $region38: #{spatial_depthwise_per_head_conv.1} parent=31 // loop_footer_branch
                %168 = sbr.rel target = $region34
              $region39: #{spatial_depthwise_per_head_conv.1} parent=31 // loop_exit
                _
            $region32: #{spatial_depthwise_per_head_conv.1} parent=23 // pred_fallthru
              _
          $region24: #{spatial_depthwise_per_head_conv.1} parent=19 // pred_fallthru
            _
          %196 = vnop
        $region20: #{spatial_depthwise_per_head_conv.1} parent=15 // pred_fallthru
          _
        // Predicated region
        $region55: #{spatial_depthwise_per_head_conv.1} parent=15 // pred_check
          %p197 = pneg %p69
        $region56: #{spatial_depthwise_per_head_conv.1} parent=15 // pred_check_branch
          %199 = sbr.rel (%p197) target = $region58
        $region57: #{spatial_depthwise_per_head_conv.1} parent=15 // pred_region
          %p200 = scmp.lt.s32.totalorder %s16, 1
          %s201 = scalar_select %p200, %s16, 1
          %s202 = smul.addr %s201, 4
          %s203 = scalar_lea.vmem %s1, %s202
        $region58: #{spatial_depthwise_per_head_conv.1} parent=15 // pred_fallthru
          _
        // Predicated region
        $region59: #{spatial_depthwise_per_head_conv.1} parent=15 // pred_check
          %p204 = pneg %p95
        $region60: #{spatial_depthwise_per_head_conv.1} parent=15 // pred_check_branch
          %206 = sbr.rel (%p204) target = $region62
        $region61: #{spatial_depthwise_per_head_conv.1} parent=15 // pred_region
          %p207 = scmp.lt.s32.totalorder %s16, 1
          %s208 = scalar_select %p207, %s16, 1
          %s209 = scalar_lea.vmem %s2, %s208
        $region62: #{spatial_depthwise_per_head_conv.1} parent=15 // pred_fallthru
          _
      $region16: #{spatial_depthwise_per_head_conv.1} parent=5 // pred_fallthru
        _
      %p210 = scmp.le.s32.totalorder 1, %s9
      %p211 = scmp.lt.s32.totalorder %s9, 7
      %p212 = pnand %p210, %p211
      %p213 = pneg %p212
      // Predicated region
      $region63: #{spatial_depthwise_per_head_conv.1} parent=5 // pred_check
        _
      $region64: #{spatial_depthwise_per_head_conv.1} parent=5 // pred_check_branch
        %215 = sbr.rel (%p212) target = $region66
      $region65: #{spatial_depthwise_per_head_conv.1} parent=5 // pred_region
        %s216 = ssub.s32 %s9, 1
        %s217 = sand.u32 %s36, 1
        %s218 = sand.u32 %s36, 1
        %s219 = smul.addr %s218, 16
        %s220 = scalar_lea.vmem [#allocation3], %s219
        // Predicated region
        $region67: #{spatial_depthwise_per_head_conv.1} parent=65 // pred_check
          %p221 = pneg %p49
        $region68: #{spatial_depthwise_per_head_conv.1} parent=65 // pred_check_branch
          %223 = sbr.rel (%p221) target = $region70
        $region69: #{spatial_depthwise_per_head_conv.1} parent=65 // pred_region
          _
        $region70: #{spatial_depthwise_per_head_conv.1} parent=65 // pred_fallthru
          _
        %s224 = sand.u32 %s36, 1
        %s225 = sand.u32 %s36, 1
        %s226 = smul.addr %s225, 16
        %s227 = scalar_lea.vmem [#allocation3], %s226
        %p228 = pneg %p49
        %p229 = pneg %p46
        %p230 = scmp.lt.s32.totalorder %s18, 1
        %s231 = scalar_select %p230, %s18, 1
        %s232 = smul.addr %s231, 4
        %s233 = scalar_lea.vmem %s1, %s232
        %p234 = pneg %p75
        %p235 = pneg %p72
        %p236 = scmp.lt.s32.totalorder %s18, 1
        %s237 = scalar_select %p236, %s18, 1
        %s238 = scalar_lea.vmem %s2, %s237
        %p239 = pneg %p101
        %p240 = pneg %p98
        %p241 = pneg %p129
        %p242 = pneg %p126
        %s243 = sand.u32 %s116, 1
        %s244 = sand.u32 %s116, 1
        %s245 = smul.addr %s244, 16
        %s246 = scalar_lea.vmem [#allocation4], %s245
        %s247 = smul.u32 2, %s19
        %p248 = scmp.lt.s32.totalorder %s18, 1
        %s249 = scalar_select %p248, %s18, 1
        %s250 = smul.addr %s249, 4
        %s251 = scalar_lea.vmem %s1, %s250
        %p252 = scmp.lt.s32.totalorder %s18, 1
        %s253 = scalar_select %p252, %s18, 1
        %s254 = scalar_lea.vmem %s2, %s253
        %s255 = smul.u32 2, %s19
        %p256 = scmp.eq.s32.totalorder %s19, 0
        // Predicated region
        $region71: #{spatial_depthwise_per_head_conv.1} parent=65 // pred_check
          %p257 = pneg %p256
        $region72: #{spatial_depthwise_per_head_conv.1} parent=65 // pred_check_branch
          %259 = sbr.rel (%p257) target = $region74
        $region73: #{spatial_depthwise_per_head_conv.1} parent=65 // pred_region
          %260 = vst [vmem:[#allocation2] sm:$0x3] 0.0
        $region74: #{spatial_depthwise_per_head_conv.1} parent=65 // pred_fallthru
          _
        %v261 = vld [vmem:[%s220] sm:$0xff]
        %v262 = vld [vmem:[%s220 + $0x8] sm:$0xff]
        %v263 = vld [vmem:[%s251] sm:$0x7]
        %v264 = vld [vmem:[%s254] sm:$0x1]
        %v265 = vld [vmem:[#allocation2] sm:$0x3]
        %v266 = vlaneseq
        %v267 = vshrl.u32 %v266, 7
        %v268 = vsub.s32 2, %v267
        %v269 = vrot.slane %v263, %v268
        %v270 = vmul.f32 %v261, %v269
        %v271 = vmul.f32 %v262, %v269
        %v273 = vlaneseq
        %v274 = vshrl.u32 %v273, 7
        %v275 = vsub.s32 0, %v274
        %v276 = vrot.slane %v264, %v275
        %v278 = vadd.f32 %v276, %v270
        %v279 = vadd.f32 %v276, %v271
        %v280 = vlaneseq
        %v281 = vshrl.u32 %v280, 7
        %v282 = vadd.s32 %v281, 8
        %v283 = vrot.slane %v261, 7
        %v284 = vrot.slane %v262, 7
        %vm285 = vcmp.lt.s32.totalorder %v281, 1
        %v286 = vsel %vm285, %v283, %v284
        %v287 = vsel %vm285, %v284, %v283
        %vm288 = vcmp.eq.s32.totalorder %v281, 0
        %vm289 = vcmp.eq.s32.totalorder %v282, 0
        %v290 = vsel %vm288, 1, 0
        %v291 = vsel %vm289, 1, 0
        %vm292 = vcmp.eq.s32.totalorder %v290, 1
        %vm293 = vcmp.eq.s32.totalorder %v291, 1
        %v294 = vlaneseq
        %v295 = vshrl.u32 %v294, 7
        %v296 = vsub.s32 1, %v295
        %v297 = vrot.slane %v265, %v296
        %v298 = vsel %vm292, %v297, %v287
        %v299 = vsel %vm293, %v297, %v286
        %v300 = vlaneseq
        %v301 = vshrl.u32 %v300, 7
        %v302 = vsub.s32 1, %v301
        %v303 = vrot.slane %v263, %v302
        %v304 = vmul.f32 %v298, %v303
        %v305 = vmul.f32 %v299, %v303
        %v306 = vadd.f32 %v278, %v304
        %v307 = vadd.f32 %v279, %v305
        %v308 = vrot.slane %v298, 7
        %v309 = vrot.slane %v299, 7
        %v310 = vsel %vm285, %v308, %v309
        %v311 = vsel %vm285, %v309, %v308
        %v312 = vlaneseq
        %v313 = vshrl.u32 %v312, 7
        %v314 = vsub.s32 0, %v313
        %v315 = vrot.slane %v265, %v314
        %v316 = vsel %vm292, %v315, %v311
        %v317 = vsel %vm293, %v315, %v310
        %v318 = vlaneseq
        %v319 = vshrl.u32 %v318, 7
        %v320 = vsub.s32 0, %v319
        %v321 = vrot.slane %v263, %v320
        %v322 = vmul.f32 %v316, %v321
        %v323 = vmul.f32 %v317, %v321
        %v324 = vadd.f32 %v306, %v322
        %v325 = vadd.f32 %v307, %v323
        %326 = vst [vmem:[%s246] sm:$0xff] %v324
        %327 = vst [vmem:[%s246 + $0x8] sm:$0xff] %v325
        %328 = vst [vmem:[#allocation2 - $0x6] sm:$0xc0] %v262
        %s329 = sand.u32 %s116, 1
        %s330 = sand.u32 %s116, 1
        %s331 = smul.addr %s330, 16
        %s332 = scalar_lea.vmem [#allocation4], %s331
        // Predicated region
        $region75: #{spatial_depthwise_per_head_conv.1} parent=65 // pred_check
          %p333 = pneg %p126
        $region76: #{spatial_depthwise_per_head_conv.1} parent=65 // pred_check_branch
          %335 = sbr.rel (%p333) target = $region78
        $region77: #{spatial_depthwise_per_head_conv.1} parent=65 // pred_region
          %s336 = smul.u32 2, %s19
          %s337 = smul.addr %s336, 2
          %s338 = sadd.s32 %s18, %s337
          %s339 = smul.addr %s338, 8
          %s340 = scalar_lea.vmem %s3, %s339
          // Predicated region
          $region79: #{spatial_depthwise_per_head_conv.1} parent=77 // pred_check
            _
          $region80: #{spatial_depthwise_per_head_conv.1} parent=77 // pred_check_branch
            %342 = sbr.rel (0) target = $region82
          $region81: #{spatial_depthwise_per_head_conv.1} parent=77 // pred_region
            // Predicated region
            $region83: #{spatial_depthwise_per_head_conv.1} parent=81 // pred_check
              _
            $region84: #{spatial_depthwise_per_head_conv.1} parent=81 // pred_check_branch
              %344 = sbr.rel (0) target = $region86
            $region85: #{spatial_depthwise_per_head_conv.1} parent=81 // pred_region
              // Predicated region
              $region98: #{spatial_depthwise_per_head_conv.1} parent=85 // pred_check
                _
              $region99: #{spatial_depthwise_per_head_conv.1} parent=85 // pred_check_branch
                %362 = sbr.rel (0) target = $region101
              $region100: #{spatial_depthwise_per_head_conv.1} parent=85 // pred_region
                loop: start=0, step=1, limit=1
                $region102: #{spatial_depthwise_per_head_conv.1} parent=100 // loop_pre_header
                  _
                $region103: #{spatial_depthwise_per_head_conv.1} parent=100 // loop_header
                  %s364 = sphi 0, %s368
                  %p365 = scmp.ge.s32.totalorder %s364, 1
                  %s369 = sphi %s332, %s332
                  %s370 = sphi %s340, %s340
                $region104: #{spatial_depthwise_per_head_conv.1} parent=100 // loop_header_branch
                  %367 = sbr.rel (%p365) target = $region108
                $region105: #{spatial_depthwise_per_head_conv.1} parent=100 // loop_body
                  %v371 = vld [vmem:[%s369] sm:$0xff]
                  %372 = vst [vmem:[%s370] sm:$0xff] %v371
                  %v373 = vld [vmem:[%s369 + $0x8] sm:$0xff]
                  %374 = vst [vmem:[%s370 + $0x10] sm:$0xff] %v373
                $region106: #{spatial_depthwise_per_head_conv.1} parent=100 // loop_footer
                  %s368 = sadd.s32 1, %s364
                $region107: #{spatial_depthwise_per_head_conv.1} parent=100 // loop_footer_branch
                  %363 = sbr.rel target = $region103
                $region108: #{spatial_depthwise_per_head_conv.1} parent=100 // loop_exit
                  _
              $region101: #{spatial_depthwise_per_head_conv.1} parent=85 // pred_fallthru
                _
              // Predicated region
              $region109: #{spatial_depthwise_per_head_conv.1} parent=85 // pred_check
                _
              $region110: #{spatial_depthwise_per_head_conv.1} parent=85 // pred_check_branch
                %376 = sbr.rel target = $region112
              $region111: #{spatial_depthwise_per_head_conv.1} parent=85 // pred_region
                _
              $region112: #{spatial_depthwise_per_head_conv.1} parent=85 // pred_fallthru
                _
            $region86: #{spatial_depthwise_per_head_conv.1} parent=81 // pred_fallthru
              _
            // Predicated region
            $region87: #{spatial_depthwise_per_head_conv.1} parent=81 // pred_check
              _
            $region88: #{spatial_depthwise_per_head_conv.1} parent=81 // pred_check_branch
              %346 = sbr.rel target = $region90
            $region89: #{spatial_depthwise_per_head_conv.1} parent=81 // pred_region
              %s348 = ssub.s32 256, 1
              loop: start=0, step=1, limit=1
              $region91: #{spatial_depthwise_per_head_conv.1} parent=89 // loop_pre_header
                _
              $region92: #{spatial_depthwise_per_head_conv.1} parent=89 // loop_header
                %s350 = sphi 0, %s354
                %p351 = scmp.ge.s32.totalorder %s350, 1
                %s355 = sphi %s332, %s332
                %s356 = sphi %s340, %s340
              $region93: #{spatial_depthwise_per_head_conv.1} parent=89 // loop_header_branch
                %353 = sbr.rel (%p351) target = $region97
              $region94: #{spatial_depthwise_per_head_conv.1} parent=89 // loop_body
                %v357 = vld [vmem:[%s355] sm:%s348]
                %358 = vst [vmem:[%s356] sm:%s348] %v357
                %v359 = vld [vmem:[%s355 + $0x8] sm:%s348]
                %360 = vst [vmem:[%s356 + $0x10] sm:%s348] %v359
              $region95: #{spatial_depthwise_per_head_conv.1} parent=89 // loop_footer
                %s354 = sadd.s32 1, %s350
              $region96: #{spatial_depthwise_per_head_conv.1} parent=89 // loop_footer_branch
                %349 = sbr.rel target = $region92
              $region97: #{spatial_depthwise_per_head_conv.1} parent=89 // loop_exit
                _
            $region90: #{spatial_depthwise_per_head_conv.1} parent=81 // pred_fallthru
              _
          $region82: #{spatial_depthwise_per_head_conv.1} parent=77 // pred_fallthru
            _
          %377 = vnop
        $region78: #{spatial_depthwise_per_head_conv.1} parent=65 // pred_fallthru
          _
      $region66: #{spatial_depthwise_per_head_conv.1} parent=5 // pred_fallthru
        _
      %p378 = scmp.le.s32.totalorder 2, %s9
      // Predicated region
      $region113: #{spatial_depthwise_per_head_conv.1} parent=5 // pred_check
        %p379 = pneg %p378
      $region114: #{spatial_depthwise_per_head_conv.1} parent=5 // pred_check_branch
        %381 = sbr.rel (%p379) target = $region116
      $region115: #{spatial_depthwise_per_head_conv.1} parent=5 // pred_region
        %s382 = ssub.s32 %s9, 2
        // Predicated region
        $region117: #{spatial_depthwise_per_head_conv.1} parent=115 // pred_check
          %p383 = pneg %p132
        $region118: #{spatial_depthwise_per_head_conv.1} parent=115 // pred_check_branch
          %385 = sbr.rel (%p383) target = $region120
        $region119: #{spatial_depthwise_per_head_conv.1} parent=115 // pred_region
          %s386 = sand.u32 %s117, 1
          %s387 = sand.u32 %s117, 1
          %s388 = smul.addr %s387, 16
          %s389 = scalar_lea.vmem [#allocation4], %s388
        $region120: #{spatial_depthwise_per_head_conv.1} parent=115 // pred_fallthru
          _
      $region116: #{spatial_depthwise_per_head_conv.1} parent=5 // pred_fallthru
        _
    $region6: #{spatial_depthwise_per_head_conv.1} parent=1 // loop_footer
      %s13 = sadd.s32 1, %s9
    $region7: #{spatial_depthwise_per_head_conv.1} parent=1 // loop_footer_branch
      %8 = sbr.rel target = $region3
    $region8: #{spatial_depthwise_per_head_conv.1} parent=1 // loop_exit
      _

</llo_original>
